<compile_context>
chip_gen: v7x
topology: tpu7x:2x2x1
jax: 0.10.0
libtpu: 0.0.40
codegen_flags: <defaults>
</compile_context>

<pallas_src>
import jax
import jax.numpy as jnp
import numpy as np
from jax.experimental import pallas as pl
from jax.experimental.pallas import tpu as pltpu

EPS = 1e-5

_LANE = 128
_SUBLANE = 8
_DEFAULT_BLOCK_BYTES = 3 << 20      # target *padded* VMEM footprint per x block
_VMEM_LIMIT_BYTES = 32 << 20        # safe on v5e/v6e/v7x (>= default on all)


# ----------------------------- kernels -------------------------------------

def _revin_norm_fused_kernel(x_ref, w_ref, b_ref, y_ref, stats_ref):
    # x_ref block: (TB, L, C) — native layout, reduce over the sublane (L) axis.
    # w_ref / b_ref: (1, 1, C).  stats_ref: (TB, 2, C) = [mean; std].
    inv_len = 1.0 / x_ref.shape[1]

    # Pass 1: mean (f32 accumulation).  Re-read the ref per pass so no full
    # f32 copy of the block stays live across phases.
    mean = jnp.sum(x_ref[...].astype(jnp.float32), axis=1, keepdims=True) * inv_len

    # Pass 2: two-pass (centered) variance — robust to large level offsets.
    xc = x_ref[...].astype(jnp.float32) - mean
    var = jnp.sum(xc * xc, axis=1, keepdims=True) * inv_len
    std = jnp.sqrt(var + EPS)

    # Pass 3: normalize + affine.  scale folded on the tiny stats tile only.
    scale = w_ref[...].astype(jnp.float32) / std
    y_ref[...] = ((x_ref[...].astype(jnp.float32) - mean) * scale
                  + b_ref[...].astype(jnp.float32)).astype(y_ref.dtype)

    stats_ref[:, 0:1, :] = mean
    stats_ref[:, 1:2, :] = std


def _revin_stats_kernel(x_ref, stats_ref, mean_acc, m2_acc):
    # Chunked statistics: grid = (rows, L-chunks), L axis "arbitrary".
    # Per chunk: two-pass chunk mean / M2, combined with the running stats via
    # Chan's parallel-variance formula (numerically stable).
    l = pl.program_id(1)

    @pl.when(l == 0)
    def _():
        mean_acc[...] = jnp.zeros_like(mean_acc)
        m2_acc[...] = jnp.zeros_like(m2_acc)

    xf = x_ref[...].astype(jnp.float32)          # (1, TL, C) chunk (small)
    tl = xf.shape[1]
    cmean = jnp.sum(xf, axis=1, keepdims=True) * (1.0 / tl)
    xc = xf - cmean
    cm2 = jnp.sum(xc * xc, axis=1, keepdims=True)

    n_prev = (l * tl).astype(jnp.float32)
    n_new = n_prev + tl
    delta = cmean - mean_acc[...]
    mean_acc[...] = mean_acc[...] + delta * (tl / n_new)
    m2_acc[...] = m2_acc[...] + cm2 + delta * delta * (n_prev * tl / n_new)

    @pl.when(l == pl.num_programs(1) - 1)
    def _():
        var = m2_acc[...] / n_new                # biased (unbiased=False)
        std = jnp.sqrt(var + EPS)
        stats_ref[:, 0:1, :] = mean_acc[...]
        stats_ref[:, 1:2, :] = std


def _revin_norm_apply_kernel(x_ref, stats_ref, w_ref, b_ref, y_ref):
    # Streamed normalize for the chunked path.
    mean = stats_ref[:, 0:1, :]
    std = stats_ref[:, 1:2, :]
    scale = w_ref[...].astype(jnp.float32) / std
    y_ref[...] = ((x_ref[...].astype(jnp.float32) - mean) * scale
                  + b_ref[...].astype(jnp.float32)).astype(y_ref.dtype)


def _revin_denorm_kernel(x_ref, mean_ref, std_ref, w_ref, b_ref, y_ref):
    # y = (x - b) / (w + eps^2) * std + mean
    a = std_ref[...].astype(jnp.float32) / (w_ref[...].astype(jnp.float32) + EPS * EPS)
    y_ref[...] = ((x_ref[...].astype(jnp.float32) - b_ref[...].astype(jnp.float32)) * a
                  + mean_ref[...].astype(jnp.float32)).astype(y_ref.dtype)


# ----------------------------- tiling helpers --------------------------------

def _round_up(n, m):
    return -(-n // m) * m


def _padded_block_bytes(rows, seq, chans, itemsize):
    # VMEM footprint of a (rows, seq, chans) tile: chans on the 128-lane axis,
    # seq on the 8-sublane axis (both padded).
    return rows * _round_up(seq, _SUBLANE) * _round_up(chans, _LANE) * itemsize


def _tensorcores_per_chip():
    try:
        kind = jax.devices()[0].device_kind.lower()
    except Exception:
        return 1
    return 2 if "v7" in kind else 1              # v5e/v6e: 1 TC; v7x: 2 TCs


def _pick_tiles(B, L, C, itemsize, block_budget):
    """Return (rows_per_block, seq_per_block)."""
    per_row = _padded_block_bytes(1, L, C, itemsize)
    n_tc = _tensorcores_per_chip()
    if per_row <= block_budget:
        tb = max(1, min(B, block_budget // per_row))
        if n_tc >= 2 and B >= 2:
            tb = min(tb, max(1, B // 2))          # keep >=2 row steps (dual-TC only)
        while B % tb:
            tb -= 1
        if n_tc >= 2 and (B // tb) % 2 == 1:
            # prefer an even number of row steps across two TCs, but never
            # shrink the block below half its size for it.
            for t in range(tb, max(tb // 2, 1) - 1, -1):
                if B % t == 0 and (B // t) % 2 == 0:
                    tb = t
                    break
        return tb, L
    # A single row is too big: chunk the sequence (sublane) axis, multiple of 8.
    max_seq = block_budget // (_round_up(C, _LANE) * itemsize)
    max_seq = max(_SUBLANE, (max_seq // _SUBLANE) * _SUBLANE)
    tl = None
    for cand in range(_SUBLANE, min(L, max_seq) + 1, _SUBLANE):
        if L % cand == 0:
            tl = cand
    if tl is None:
        # TODO(synk): L with no multiple-of-8 divisor under budget (e.g. huge
        # prime L): fall back to whole-row blocks instead of masking a ragged tail.
        return 1, L
    return 1, tl


# ----------------------------- wrappers -------------------------------------

def revin_norm(x, weight, bias, *, block_budget_bytes=_DEFAULT_BLOCK_BYTES):
    """RevIN mode='norm'. x: (B, L, C); weight/bias: (C,).
    Returns (y, mean, stdev); mean/stdev are (B, 1, C) float32 (torch keepdim)."""
    B, L, C = x.shape
    w3 = jnp.asarray(weight, jnp.float32).reshape(1, 1, C)
    b3 = jnp.asarray(bias, jnp.float32).reshape(1, 1, C)
    itemsize = jnp.dtype(x.dtype).itemsize
    tb, tl = _pick_tiles(B, L, C, itemsize, block_budget_bytes)

    if tl == L:
        # Whole rows fit: fully fused — x read once, y + stats written once.
        y, stats = pl.pallas_call(
            _revin_norm_fused_kernel,
            out_shape=(jax.ShapeDtypeStruct((B, L, C), x.dtype),
                       jax.ShapeDtypeStruct((B, 2, C), jnp.float32)),
            grid_spec=pltpu.PrefetchScalarGridSpec(
                num_scalar_prefetch=0,
                grid=(B // tb,),
                in_specs=[
                    pl.BlockSpec((tb, L, C), lambda i: (i, 0, 0)),
                    pl.BlockSpec((1, 1, C), lambda i: (0, 0, 0)),
                    pl.BlockSpec((1, 1, C), lambda i: (0, 0, 0)),
                ],
                out_specs=[
                    pl.BlockSpec((tb, L, C), lambda i: (i, 0, 0)),
                    pl.BlockSpec((tb, 2, C), lambda i: (i, 0, 0)),
                ],
            ),
            compiler_params=pltpu.CompilerParams(
                dimension_semantics=("parallel",),
                vmem_limit_bytes=_VMEM_LIMIT_BYTES),
        )(x, w3, b3)
    else:
        nl = L // tl
        # Pass 1: accumulate per-(row, channel) mean / M2 over L chunks.
        stats = pl.pallas_call(
            _revin_stats_kernel,
            out_shape=jax.ShapeDtypeStruct((B, 2, C), jnp.float32),
            grid_spec=pltpu.PrefetchScalarGridSpec(
                num_scalar_prefetch=0,
                grid=(B, nl),
                in_specs=[pl.BlockSpec((1, tl, C), lambda i, l: (i, l, 0))],
                out_specs=pl.BlockSpec((1, 2, C), lambda i, l: (i, 0, 0)),
                scratch_shapes=[pltpu.VMEM((1, 1, C), jnp.float32),
                                pltpu.VMEM((1, 1, C), jnp.float32)],
            ),
            compiler_params=pltpu.CompilerParams(
                dimension_semantics=("parallel", "arbitrary"),
                vmem_limit_bytes=_VMEM_LIMIT_BYTES),
        )(x)
        # Pass 2: streamed normalize.
        y = pl.pallas_call(
            _revin_norm_apply_kernel,
            out_shape=jax.ShapeDtypeStruct((B, L, C), x.dtype),
            grid_spec=pltpu.PrefetchScalarGridSpec(
                num_scalar_prefetch=0,
                grid=(B, nl),
                in_specs=[
                    pl.BlockSpec((1, tl, C), lambda i, l: (i, l, 0)),
                    pl.BlockSpec((1, 2, C), lambda i, l: (i, 0, 0)),
                    pl.BlockSpec((1, 1, C), lambda i, l: (0, 0, 0)),
                    pl.BlockSpec((1, 1, C), lambda i, l: (0, 0, 0)),
                ],
                out_specs=pl.BlockSpec((1, tl, C), lambda i, l: (i, l, 0)),
            ),
            compiler_params=pltpu.CompilerParams(
                dimension_semantics=("parallel", "arbitrary"),
                vmem_limit_bytes=_VMEM_LIMIT_BYTES),
        )(x, stats, w3, b3)

    mean = stats[:, 0:1, :]
    std = stats[:, 1:2, :]
    return y, mean, std


def revin_denorm(x, mean, std, weight, bias, *, block_budget_bytes=_DEFAULT_BLOCK_BYTES):
    """RevIN mode='denorm'. x: (B, L, C); mean/std: (B, 1, C); weight/bias: (C,)."""
    B, L, C = x.shape
    mean3 = jnp.asarray(mean, jnp.float32).reshape(B, 1, C)
    std3 = jnp.asarray(std, jnp.float32).reshape(B, 1, C)
    w3 = jnp.asarray(weight, jnp.float32).reshape(1, 1, C)
    b3 = jnp.asarray(bias, jnp.float32).reshape(1, 1, C)
    itemsize = jnp.dtype(x.dtype).itemsize
    tb, tl = _pick_tiles(B, L, C, itemsize, block_budget_bytes)
    nl = L // tl

    return pl.pallas_call(
        _revin_denorm_kernel,
        out_shape=jax.ShapeDtypeStruct((B, L, C), x.dtype),
        grid_spec=pltpu.PrefetchScalarGridSpec(
            num_scalar_prefetch=0,
            grid=(B // tb, nl),
            in_specs=[
                pl.BlockSpec((tb, tl, C), lambda i, l: (i, l, 0)),
                pl.BlockSpec((tb, 1, C), lambda i, l: (i, 0, 0)),
                pl.BlockSpec((tb, 1, C), lambda i, l: (i, 0, 0)),
                pl.BlockSpec((1, 1, C), lambda i, l: (0, 0, 0)),
                pl.BlockSpec((1, 1, C), lambda i, l: (0, 0, 0)),
            ],
            out_specs=pl.BlockSpec((tb, tl, C), lambda i, l: (i, l, 0)),
        ),
        compiler_params=pltpu.CompilerParams(
            dimension_semantics=("parallel", "arbitrary"),
            vmem_limit_bytes=_VMEM_LIMIT_BYTES),
    )(x, mean3, std3, w3, b3)


# ----------------------------- reference ------------------------------------

def _ref_norm(x, weight, bias):
    mean = jnp.mean(x, axis=1, keepdims=True)
    var = jnp.mean((x - mean) ** 2, axis=1, keepdims=True)
    std = jnp.sqrt(var + EPS)
    y = (x - mean) / std
    y = y * weight.reshape(1, 1, -1) + bias.reshape(1, 1, -1)
    return y, mean, std


def _ref_denorm(x, mean, std, weight, bias):
    y = x - bias.reshape(1, 1, -1)
    y = y / (weight.reshape(1, 1, -1) + EPS * EPS)
    y = y * std + mean
    return y


# ------------------------------ main -----------------------------------------

if __name__ == "__main__":
    def check(name, got, want, rtol, atol):
        np.testing.assert_allclose(
            np.asarray(jnp.asarray(got, jnp.float32)),
            np.asarray(jnp.asarray(want, jnp.float32)),
            rtol=rtol, atol=atol, err_msg=name)

    B, L, C = 4, 96, 6   # batch, seq length, num_features

    key = jax.random.PRNGKey(0)
    kx, kw, kb, ko = jax.random.split(key, 4)
    x = jax.random.normal(kx, (B, L, C), dtype=jnp.float32)
    affine_weight = jnp.ones((C,), jnp.float32) + 0.1 * jax.random.normal(kw, (C,), jnp.float32)
    affine_bias = 0.1 * jax.random.normal(kb, (C,), jnp.float32)

    # --- case 1: f32, fused single-block path + denorm round trip -------------
    y, mean, std = revin_norm(x, affine_weight, affine_bias)
    y = jax.block_until_ready(y)
    x_rec = jax.block_until_ready(revin_denorm(y, mean, std, affine_weight, affine_bias))
    y_r, m_r, s_r = _ref_norm(x, affine_weight, affine_bias)
    check("y", y, y_r, 1e-5, 1e-5)
    check("mean", mean, m_r, 1e-5, 1e-5)
    check("std", std, s_r, 1e-5, 1e-5)
    check("x_rec", x_rec, _ref_denorm(y_r, m_r, s_r, affine_weight, affine_bias), 1e-5, 1e-5)
    check("roundtrip", x_rec, x, 1e-4, 1e-4)

    # --- case 2: large per-channel level offsets (two-pass variance path) -----
    offs = 200.0 * (1.0 + jnp.arange(C, dtype=jnp.float32)).reshape(1, 1, C)
    x_off = x + offs + 50.0 * jax.random.normal(ko, (B, 1, C), dtype=jnp.float32)
    y2, m2, s2 = revin_norm(x_off, affine_weight, affine_bias)
    jax.block_until_ready(y2)
    y2_r, m2_r, s2_r = _ref_norm(x_off, affine_weight, affine_bias)
    check("y(offset)", y2, y2_r, 1e-3, 5e-2)
    check("mean(offset)", m2, m2_r, 1e-4, 2e-2)
    check("std(offset)", s2, s2_r, 1e-3, 5e-3)

    # --- case 3: bf16 activations ----------------------------------------------
    xb = x.astype(jnp.bfloat16)
    y3, m3, s3 = revin_norm(xb, affine_weight, affine_bias)
    jax.block_until_ready(y3)
    y3_r, m3_r, s3_r = _ref_norm(xb.astype(jnp.float32), affine_weight, affine_bias)
    check("y(bf16)", y3, y3_r, 2e-2, 3e-2)
    check("mean(bf16)", m3, m3_r, 1e-4, 1e-4)
    check("std(bf16)", s3, s3_r, 1e-3, 1e-3)

    # --- case 4: forced L-chunked path (stats accumulate + apply kernels) -----
    tiny_budget = 16 << 10
    tb4, tl4 = _pick_tiles(B, L, C, 4, tiny_budget)
    assert tl4 < L, "expected the forced-chunked path"
    y4, m4, s4 = revin_norm(x_off, affine_weight, affine_bias,
                            block_budget_bytes=tiny_budget)
    x4_rec = revin_denorm(y4, m4, s4, affine_weight, affine_bias,
                          block_budget_bytes=tiny_budget)
    jax.block_until_ready(x4_rec)
    check("y(chunked)", y4, y2_r, 1e-3, 5e-2)
    check("mean(chunked)", m4, m2_r, 1e-4, 2e-2)
    check("std(chunked)", s4, s2_r, 1e-3, 5e-3)
    check("roundtrip(chunked)", x4_rec, x_off, 1e-4, 1e-3)

    print("KERNEL_OK")
</pallas_src>

<mosaic_0001>
module attributes {stable_mosaic.version = 11 : i64} {
  func.func @_revin_norm_fused_kernel(%arg0: i32, %arg1: memref<4x96x6xf32, #tpu.memory_space<vmem>>, %arg2: memref<1x1x6xf32, #tpu.memory_space<vmem>>, %arg3: memref<1x1x6xf32, #tpu.memory_space<vmem>>, %arg4: memref<4x96x6xf32, #tpu.memory_space<vmem>>, %arg5: memref<4x2x6xf32, #tpu.memory_space<vmem>>) attributes {dimension_semantics = [#tpu.dimension_semantics<parallel>], iteration_bounds = array<i64: 1>, scalar_prefetch = 0 : i64, scratch_operands = 0 : i64, tpu.core_type = #tpu.core_type<tc>, window_params = [{transform_indices = @transform_0, window_bounds = array<i64: 4, 96, 6>}, {pipeline_mode = #tpu.pipeline_mode<synchronous>, transform_indices = @transform_1, window_bounds = array<i64: 1, 1, 6>}, {pipeline_mode = #tpu.pipeline_mode<synchronous>, transform_indices = @transform_2, window_bounds = array<i64: 1, 1, 6>}, {transform_indices = @transform_3, window_bounds = array<i64: 4, 96, 6>}, {transform_indices = @transform_4, window_bounds = array<i64: 4, 2, 6>}]} {
    %c0 = arith.constant 0 : index
    %c0_0 = arith.constant 0 : index
    %c0_1 = arith.constant 0 : index
    %0 = vector.load %arg1[%c0, %c0_0, %c0_1] : memref<4x96x6xf32, #tpu.memory_space<vmem>>, vector<4x96x6xf32>
    %cst = arith.constant dense<0.000000e+00> : vector<4x6xf32>
    %1 = vector.multi_reduction <add>, %0, %cst [1] : vector<4x96x6xf32> to vector<4x6xf32>
    %2 = vector.shape_cast %1 : vector<4x6xf32> to vector<4x1x6xf32>
    %cst_2 = arith.constant 0.010416667 : f32
    %3 = vector.broadcast %cst_2 : f32 to vector<4x1x6xf32>
    %4 = arith.mulf %2, %3 : vector<4x1x6xf32>
    %c0_3 = arith.constant 0 : index
    %c0_4 = arith.constant 0 : index
    %c0_5 = arith.constant 0 : index
    %5 = vector.load %arg1[%c0_3, %c0_4, %c0_5] : memref<4x96x6xf32, #tpu.memory_space<vmem>>, vector<4x96x6xf32>
    %6 = vector.broadcast %4 : vector<4x1x6xf32> to vector<4x96x6xf32>
    %7 = arith.subf %5, %6 : vector<4x96x6xf32>
    %8 = arith.mulf %7, %7 : vector<4x96x6xf32>
    %cst_6 = arith.constant dense<0.000000e+00> : vector<4x6xf32>
    %9 = vector.multi_reduction <add>, %8, %cst_6 [1] : vector<4x96x6xf32> to vector<4x6xf32>
    %10 = vector.shape_cast %9 : vector<4x6xf32> to vector<4x1x6xf32>
    %cst_7 = arith.constant 0.010416667 : f32
    %11 = vector.broadcast %cst_7 : f32 to vector<4x1x6xf32>
    %12 = arith.mulf %10, %11 : vector<4x1x6xf32>
    %cst_8 = arith.constant 9.99999974E-6 : f32
    %13 = vector.broadcast %cst_8 : f32 to vector<4x1x6xf32>
    %14 = arith.addf %12, %13 : vector<4x1x6xf32>
    %15 = math.sqrt %14 : vector<4x1x6xf32>
    %c0_9 = arith.constant 0 : index
    %c0_10 = arith.constant 0 : index
    %c0_11 = arith.constant 0 : index
    %16 = vector.load %arg2[%c0_9, %c0_10, %c0_11] : memref<1x1x6xf32, #tpu.memory_space<vmem>>, vector<1x1x6xf32>
    %17 = vector.broadcast %16 : vector<1x1x6xf32> to vector<4x1x6xf32>
    %18 = arith.divf %17, %15 : vector<4x1x6xf32>
    %c0_12 = arith.constant 0 : index
    %c0_13 = arith.constant 0 : index
    %c0_14 = arith.constant 0 : index
    %19 = vector.load %arg1[%c0_12, %c0_13, %c0_14] : memref<4x96x6xf32, #tpu.memory_space<vmem>>, vector<4x96x6xf32>
    %20 = vector.broadcast %4 : vector<4x1x6xf32> to vector<4x96x6xf32>
    %21 = arith.subf %19, %20 : vector<4x96x6xf32>
    %22 = vector.broadcast %18 : vector<4x1x6xf32> to vector<4x96x6xf32>
    %23 = arith.mulf %21, %22 : vector<4x96x6xf32>
    %c0_15 = arith.constant 0 : index
    %c0_16 = arith.constant 0 : index
    %c0_17 = arith.constant 0 : index
    %24 = vector.load %arg3[%c0_15, %c0_16, %c0_17] : memref<1x1x6xf32, #tpu.memory_space<vmem>>, vector<1x1x6xf32>
    %25 = vector.broadcast %24 : vector<1x1x6xf32> to vector<4x96x6xf32>
    %26 = arith.addf %23, %25 : vector<4x96x6xf32>
    %c0_18 = arith.constant 0 : index
    %c0_19 = arith.constant 0 : index
    %c0_20 = arith.constant 0 : index
    %27 = vector.load %arg4[%c0_18, %c0_19, %c0_20] : memref<4x96x6xf32, #tpu.memory_space<vmem>>, vector<4x96x6xf32>
    tpu.vector_store %arg4[%c0_18, %c0_19, %c0_20], %26 {strides = array<i32>} : memref<4x96x6xf32, #tpu.memory_space<vmem>>, vector<4x96x6xf32>,
    %c0_21 = arith.constant 0 : index
    %c0_22 = arith.constant 0 : index
    %c0_23 = arith.constant 0 : index
    %28 = vector.load %arg5[%c0_21, %c0_22, %c0_23] : memref<4x2x6xf32, #tpu.memory_space<vmem>>, vector<4x1x6xf32>
    tpu.vector_store %arg5[%c0_21, %c0_22, %c0_23], %4 {strides = array<i32>} : memref<4x2x6xf32, #tpu.memory_space<vmem>>, vector<4x1x6xf32>,
    %c0_24 = arith.constant 0 : index
    %c1 = arith.constant 1 : index
    %c0_25 = arith.constant 0 : index
    %29 = vector.load %arg5[%c0_24, %c1, %c0_25] : memref<4x2x6xf32, #tpu.memory_space<vmem>>, vector<4x1x6xf32>
    tpu.vector_store %arg5[%c0_24, %c1, %c0_25], %15 {strides = array<i32>} : memref<4x2x6xf32, #tpu.memory_space<vmem>>, vector<4x1x6xf32>,
    return
  }
  func.func @transform_0(%arg0: i32) -> (i32, i32, i32) {
    %c0_i32 = arith.constant 0 : i32
    %c0_i32_0 = arith.constant 0 : i32
    %c0_i32_1 = arith.constant 0 : i32
    return %arg0, %c0_i32, %c0_i32_0 : i32, i32, i32
  }
  func.func @transform_1(%arg0: i32) -> (i32, i32, i32) {
    %c0_i32 = arith.constant 0 : i32
    %c0_i32_0 = arith.constant 0 : i32
    %c0_i32_1 = arith.constant 0 : i32
    %c0_i32_2 = arith.constant 0 : i32
    return %c0_i32, %c0_i32_0, %c0_i32_1 : i32, i32, i32
  }
  func.func @transform_2(%arg0: i32) -> (i32, i32, i32) {
    %c0_i32 = arith.constant 0 : i32
    %c0_i32_0 = arith.constant 0 : i32
    %c0_i32_1 = arith.constant 0 : i32
    %c0_i32_2 = arith.constant 0 : i32
    return %c0_i32, %c0_i32_0, %c0_i32_1 : i32, i32, i32
  }
  func.func @transform_3(%arg0: i32) -> (i32, i32, i32) {
    %c0_i32 = arith.constant 0 : i32
    %c0_i32_0 = arith.constant 0 : i32
    %c0_i32_1 = arith.constant 0 : i32
    return %arg0, %c0_i32, %c0_i32_0 : i32, i32, i32
  }
  func.func @transform_4(%arg0: i32) -> (i32, i32, i32) {
    %c0_i32 = arith.constant 0 : i32
    %c0_i32_0 = arith.constant 0 : i32
    %c0_i32_1 = arith.constant 0 : i32
    return %arg0, %c0_i32, %c0_i32_0 : i32, i32, i32
  }
}

</mosaic_0001>

<llo_original>
// kernel: tpu_custom_call.1
$region0: #{tpu_custom_call.1}
  #allocation0 [shape = 'u32[]', space=smem, size = 0x4, offset = 0x4, fixed_abs, tag = 'smem constant byte address 0x4 - core index']
  #allocation1 [shape = 'u32[144,128]{1,0:T(1,128)}', space=vmem, size = 0x12000, scoped, tag = 'internal scratch']
  %s0 = inlined_call_operand.vmem [shape: f32[4,96,6], index: 0, kind: input, shape index: {}]
  %s1 = inlined_call_operand.vmem [shape: f32[1,1,6], index: 1, kind: input, shape index: {}]
  %s2 = inlined_call_operand.vmem [shape: f32[1,1,6], index: 2, kind: input, shape index: {}]
  %s3 = inlined_call_operand.vmem [shape: f32[4,96,6], index: 3, kind: output, shape index: {0}]
  %s4 = inlined_call_operand.hbm [shape: f32[4,2,6], index: 4, kind: output, shape index: {1}]
  %5 = xla_tuple %s3, %s4
  %s6 = sld [smem:[#allocation0]]
  $region30: #{tpu_custom_call.1} parent=0
    _
  %s8 = ssub.s32 1, %s6
  %s9 = scalar_select 0, %s8, %s6
  $region1: #{tpu_custom_call.1} parent=0
    #allocation2 [shape = 'u8[4096]{0}', space=vmem, size = 0x1000, scoped, tag = 'output window, operand 1, single buffered']
    #allocation3 [shape = 's32[1]{0}', space=sflag, size = 0x4, scoped, tag = 'scoped memory for tpu_custom_call.1']
    %10 = vsyncpa [#allocation3], 0
    // Predicated region
    $region2: #{tpu_custom_call.1} parent=1 // pred_check
      _
    $region3: #{tpu_custom_call.1} parent=1 // pred_check_branch
      %12 = sbr.rel (0) target = $region5
    $region4: #{tpu_custom_call.1} parent=1 // pred_region
      _
    $region5: #{tpu_custom_call.1} parent=1 // pred_fallthru
      _
    // Predicated region
    $region6: #{tpu_custom_call.1} parent=1 // pred_check
      _
    $region7: #{tpu_custom_call.1} parent=1 // pred_check_branch
      %14 = sbr.rel (0) target = $region9
    $region8: #{tpu_custom_call.1} parent=1 // pred_region
      _
    $region9: #{tpu_custom_call.1} parent=1 // pred_fallthru
      _
    // Predicated region
    $region10: #{tpu_custom_call.1} parent=1 // pred_check
      _
    $region11: #{tpu_custom_call.1} parent=1 // pred_check_branch
      %16 = sbr.rel (0) target = $region13
    $region12: #{tpu_custom_call.1} parent=1 // pred_region
      _
    $region13: #{tpu_custom_call.1} parent=1 // pred_fallthru
      _
    %v17 = vld [vmem:[%s0] sm:$0xff]
    %v18 = vld [vmem:[%s0 + $0x8] sm:$0xff]
    %v19 = vld [vmem:[%s0 + $0x10] sm:$0xff]
    %v20 = vld [vmem:[%s0 + $0x18] sm:$0xff]
    %v21 = vld [vmem:[%s0 + $0x20] sm:$0xff]
    %v22 = vld [vmem:[%s0 + $0x28] sm:$0xff]
    %v23 = vld [vmem:[%s0 + $0x30] sm:$0xff]
    %v24 = vld [vmem:[%s0 + $0x38] sm:$0xff]
    %v25 = vld [vmem:[%s0 + $0x40] sm:$0xff]
    %v26 = vld [vmem:[%s0 + $0x48] sm:$0xff]
    %v27 = vld [vmem:[%s0 + $0x50] sm:$0xff]
    %v28 = vld [vmem:[%s0 + $0x58] sm:$0xff]
    %v29 = vld [vmem:[%s0 + $0x60] sm:$0xff]
    %v30 = vld [vmem:[%s0 + $0x68] sm:$0xff]
    %v31 = vld [vmem:[%s0 + $0x70] sm:$0xff]
    %v32 = vld [vmem:[%s0 + $0x78] sm:$0xff]
    %v33 = vld [vmem:[%s0 + $0x80] sm:$0xff]
    %v34 = vld [vmem:[%s0 + $0x88] sm:$0xff]
    %v35 = vld [vmem:[%s0 + $0x90] sm:$0xff]
    %v36 = vld [vmem:[%s0 + $0x98] sm:$0xff]
    %v37 = vld [vmem:[%s0 + $0xa0] sm:$0xff]
    %v38 = vld [vmem:[%s0 + $0xa8] sm:$0xff]
    %v39 = vld [vmem:[%s0 + $0xb0] sm:$0xff]
    %v40 = vld [vmem:[%s0 + $0xb8] sm:$0xff]
    %v41 = vld [vmem:[%s0 + $0xc0] sm:$0xff]
    %v42 = vld [vmem:[%s0 + $0xc8] sm:$0xff]
    %v43 = vld [vmem:[%s0 + $0xd0] sm:$0xff]
    %v44 = vld [vmem:[%s0 + $0xd8] sm:$0xff]
    %v45 = vld [vmem:[%s0 + $0xe0] sm:$0xff]
    %v46 = vld [vmem:[%s0 + $0xe8] sm:$0xff]
    %v47 = vld [vmem:[%s0 + $0xf0] sm:$0xff]
    %v48 = vld [vmem:[%s0 + $0xf8] sm:$0xff]
    %v49 = vld [vmem:[%s0 + $0x100] sm:$0xff]
    %v50 = vld [vmem:[%s0 + $0x108] sm:$0xff]
    %v51 = vld [vmem:[%s0 + $0x110] sm:$0xff]
    %v52 = vld [vmem:[%s0 + $0x118] sm:$0xff]
    %v53 = vld [vmem:[%s0 + $0x120] sm:$0xff]
    %v54 = vld [vmem:[%s0 + $0x128] sm:$0xff]
    %v55 = vld [vmem:[%s0 + $0x130] sm:$0xff]
    %v56 = vld [vmem:[%s0 + $0x138] sm:$0xff]
    %v57 = vld [vmem:[%s0 + $0x140] sm:$0xff]
    %v58 = vld [vmem:[%s0 + $0x148] sm:$0xff]
    %v59 = vld [vmem:[%s0 + $0x150] sm:$0xff]
    %v60 = vld [vmem:[%s0 + $0x158] sm:$0xff]
    %v61 = vld [vmem:[%s0 + $0x160] sm:$0xff]
    %v62 = vld [vmem:[%s0 + $0x168] sm:$0xff]
    %v63 = vld [vmem:[%s0 + $0x170] sm:$0xff]
    %v64 = vld [vmem:[%s0 + $0x178] sm:$0xff]
    %vm65 = vcmask 48128
    %v66 = vsel %vm65, %v17, 0.0
    %v67 = vsel %vm65, %v18, 0.0
    %v68 = vadd.f32 %v66, %v67
    %v69 = vsel %vm65, %v19, 0.0
    %v70 = vadd.f32 %v68, %v69
    %v71 = vsel %vm65, %v20, 0.0
    %v72 = vadd.f32 %v70, %v71
    %v73 = vsel %vm65, %v21, 0.0
    %v74 = vadd.f32 %v72, %v73
    %v75 = vsel %vm65, %v22, 0.0
    %v76 = vadd.f32 %v74, %v75
    %v77 = vsel %vm65, %v23, 0.0
    %v78 = vadd.f32 %v76, %v77
    %v79 = vsel %vm65, %v24, 0.0
    %v80 = vadd.f32 %v78, %v79
    %v81 = vsel %vm65, %v25, 0.0
    %v82 = vadd.f32 %v80, %v81
    %v83 = vsel %vm65, %v26, 0.0
    %v84 = vadd.f32 %v82, %v83
    %v85 = vsel %vm65, %v27, 0.0
    %v86 = vadd.f32 %v84, %v85
    %v87 = vsel %vm65, %v28, 0.0
    %v88 = vadd.f32 %v86, %v87
    %v89 = vrot.slane %v88, 4
    %v90 = vadd.f32 %v88, %v89
    %v91 = vrot.slane %v90, 2
    %v92 = vadd.f32 %v90, %v91
    %v93 = vrot.slane %v92, 1
    %v94 = vadd.f32 %v92, %v93
    %v95 = vsel %vm65, %v29, 0.0
    %v96 = vsel %vm65, %v30, 0.0
    %v97 = vadd.f32 %v95, %v96
    %v98 = vsel %vm65, %v31, 0.0
    %v99 = vadd.f32 %v97, %v98
    %v100 = vsel %vm65, %v32, 0.0
    %v101 = vadd.f32 %v99, %v100
    %v102 = vsel %vm65, %v33, 0.0
    %v103 = vadd.f32 %v101, %v102
    %v104 = vsel %vm65, %v34, 0.0
    %v105 = vadd.f32 %v103, %v104
    %v106 = vsel %vm65, %v35, 0.0
    %v107 = vadd.f32 %v105, %v106
    %v108 = vsel %vm65, %v36, 0.0
    %v109 = vadd.f32 %v107, %v108
    %v110 = vsel %vm65, %v37, 0.0
    %v111 = vadd.f32 %v109, %v110
    %v112 = vsel %vm65, %v38, 0.0
    %v113 = vadd.f32 %v111, %v112
    %v114 = vsel %vm65, %v39, 0.0
    %v115 = vadd.f32 %v113, %v114
    %v116 = vsel %vm65, %v40, 0.0
    %v117 = vadd.f32 %v115, %v116
    %v118 = vrot.slane %v117, 4
    %v119 = vadd.f32 %v117, %v118
    %v120 = vrot.slane %v119, 2
    %v121 = vadd.f32 %v119, %v120
    %v122 = vrot.slane %v121, 1
    %v123 = vadd.f32 %v121, %v122
    %v124 = vsel %vm65, %v41, 0.0
    %v125 = vsel %vm65, %v42, 0.0
    %v126 = vadd.f32 %v124, %v125
    %v127 = vsel %vm65, %v43, 0.0
    %v128 = vadd.f32 %v126, %v127
    %v129 = vsel %vm65, %v44, 0.0
    %v130 = vadd.f32 %v128, %v129
    %v131 = vsel %vm65, %v45, 0.0
    %v132 = vadd.f32 %v130, %v131
    %v133 = vsel %vm65, %v46, 0.0
    %v134 = vadd.f32 %v132, %v133
    %v135 = vsel %vm65, %v47, 0.0
    %v136 = vadd.f32 %v134, %v135
    %v137 = vsel %vm65, %v48, 0.0
    %v138 = vadd.f32 %v136, %v137
    %v139 = vsel %vm65, %v49, 0.0
    %v140 = vadd.f32 %v138, %v139
    %v141 = vsel %vm65, %v50, 0.0
    %v142 = vadd.f32 %v140, %v141
    %v143 = vsel %vm65, %v51, 0.0
    %v144 = vadd.f32 %v142, %v143
    %v145 = vsel %vm65, %v52, 0.0
    %v146 = vadd.f32 %v144, %v145
    %v147 = vrot.slane %v146, 4
    %v148 = vadd.f32 %v146, %v147
    %v149 = vrot.slane %v148, 2
    %v150 = vadd.f32 %v148, %v149
    %v151 = vrot.slane %v150, 1
    %v152 = vadd.f32 %v150, %v151
    %v153 = vsel %vm65, %v53, 0.0
    %v154 = vsel %vm65, %v54, 0.0
    %v155 = vadd.f32 %v153, %v154
    %v156 = vsel %vm65, %v55, 0.0
    %v157 = vadd.f32 %v155, %v156
    %v158 = vsel %vm65, %v56, 0.0
    %v159 = vadd.f32 %v157, %v158
    %v160 = vsel %vm65, %v57, 0.0
    %v161 = vadd.f32 %v159, %v160
    %v162 = vsel %vm65, %v58, 0.0
    %v163 = vadd.f32 %v161, %v162
    %v164 = vsel %vm65, %v59, 0.0
    %v165 = vadd.f32 %v163, %v164
    %v166 = vsel %vm65, %v60, 0.0
    %v167 = vadd.f32 %v165, %v166
    %v168 = vsel %vm65, %v61, 0.0
    %v169 = vadd.f32 %v167, %v168
    %v170 = vsel %vm65, %v62, 0.0
    %v171 = vadd.f32 %v169, %v170
    %v172 = vsel %vm65, %v63, 0.0
    %v173 = vadd.f32 %v171, %v172
    %v174 = vsel %vm65, %v64, 0.0
    %v175 = vadd.f32 %v173, %v174
    %v176 = vrot.slane %v175, 4
    %v177 = vadd.f32 %v175, %v176
    %v178 = vrot.slane %v177, 2
    %v179 = vadd.f32 %v177, %v178
    %v180 = vrot.slane %v179, 1
    %v181 = vadd.f32 %v179, %v180
    %v182 = vmul.f32 %v94, 0.010416667
    %v183 = vmul.f32 %v123, 0.010416667
    %v184 = vmul.f32 %v152, 0.010416667
    %v185 = vmul.f32 %v181, 0.010416667
    %v186 = vsub.f32 %v17, %v182
    %v187 = vsub.f32 %v18, %v182
    %v188 = vsub.f32 %v19, %v182
    %v189 = vsub.f32 %v20, %v182
    %v190 = vsub.f32 %v21, %v182
    %v191 = vsub.f32 %v22, %v182
    %v192 = vsub.f32 %v23, %v182
    %v193 = vsub.f32 %v24, %v182
    %v194 = vsub.f32 %v25, %v182
    %v195 = vsub.f32 %v26, %v182
    %v196 = vsub.f32 %v27, %v182
    %v197 = vsub.f32 %v28, %v182
    %v198 = vsub.f32 %v29, %v183
    %v199 = vsub.f32 %v30, %v183
    %v200 = vsub.f32 %v31, %v183
    %v201 = vsub.f32 %v32, %v183
    %v202 = vsub.f32 %v33, %v183
    %v203 = vsub.f32 %v34, %v183
    %v204 = vsub.f32 %v35, %v183
    %v205 = vsub.f32 %v36, %v183
    %v206 = vsub.f32 %v37, %v183
    %v207 = vsub.f32 %v38, %v183
    %v208 = vsub.f32 %v39, %v183
    %v209 = vsub.f32 %v40, %v183
    %v210 = vsub.f32 %v41, %v184
    %v211 = vsub.f32 %v42, %v184
    %v212 = vsub.f32 %v43, %v184
    %v213 = vsub.f32 %v44, %v184
    %v214 = vsub.f32 %v45, %v184
    %v215 = vsub.f32 %v46, %v184
    %v216 = vsub.f32 %v47, %v184
    %v217 = vsub.f32 %v48, %v184
    %v218 = vsub.f32 %v49, %v184
    %v219 = vsub.f32 %v50, %v184
    %v220 = vsub.f32 %v51, %v184
    %v221 = vsub.f32 %v52, %v184
    %v222 = vsub.f32 %v53, %v185
    %v223 = vsub.f32 %v54, %v185
    %v224 = vsub.f32 %v55, %v185
    %v225 = vsub.f32 %v56, %v185
    %v226 = vsub.f32 %v57, %v185
    %v227 = vsub.f32 %v58, %v185
    %v228 = vsub.f32 %v59, %v185
    %v229 = vsub.f32 %v60, %v185
    %v230 = vsub.f32 %v61, %v185
    %v231 = vsub.f32 %v62, %v185
    %v232 = vsub.f32 %v63, %v185
    %v233 = vsub.f32 %v64, %v185
    %v234 = vmul.f32 %v186, %v186
    %v235 = vmul.f32 %v187, %v187
    %v236 = vmul.f32 %v188, %v188
    %v237 = vmul.f32 %v189, %v189
    %v238 = vmul.f32 %v190, %v190
    %v239 = vmul.f32 %v191, %v191
    %v240 = vmul.f32 %v192, %v192
    %v241 = vmul.f32 %v193, %v193
    %v242 = vmul.f32 %v194, %v194
    %v243 = vmul.f32 %v195, %v195
    %v244 = vmul.f32 %v196, %v196
    %v245 = vmul.f32 %v197, %v197
    %v246 = vmul.f32 %v198, %v198
    %v247 = vmul.f32 %v199, %v199
    %v248 = vmul.f32 %v200, %v200
    %v249 = vmul.f32 %v201, %v201
    %v250 = vmul.f32 %v202, %v202
    %v251 = vmul.f32 %v203, %v203
    %v252 = vmul.f32 %v204, %v204
    %v253 = vmul.f32 %v205, %v205
    %v254 = vmul.f32 %v206, %v206
    %v255 = vmul.f32 %v207, %v207
    %v256 = vmul.f32 %v208, %v208
    %v257 = vmul.f32 %v209, %v209
    %v258 = vmul.f32 %v210, %v210
    %v259 = vmul.f32 %v211, %v211
    %v260 = vmul.f32 %v212, %v212
    %v261 = vmul.f32 %v213, %v213
    %v262 = vmul.f32 %v214, %v214
    %v263 = vmul.f32 %v215, %v215
    %v264 = vmul.f32 %v216, %v216
    %v265 = vmul.f32 %v217, %v217
    %v266 = vmul.f32 %v218, %v218
    %v267 = vmul.f32 %v219, %v219
    %v268 = vmul.f32 %v220, %v220
    %v269 = vmul.f32 %v221, %v221
    %v270 = vmul.f32 %v222, %v222
    %v271 = vmul.f32 %v223, %v223
    %v272 = vmul.f32 %v224, %v224
    %v273 = vmul.f32 %v225, %v225
    %v274 = vmul.f32 %v226, %v226
    %v275 = vmul.f32 %v227, %v227
    %v276 = vmul.f32 %v228, %v228
    %v277 = vmul.f32 %v229, %v229
    %v278 = vmul.f32 %v230, %v230
    %v279 = vmul.f32 %v231, %v231
    %v280 = vmul.f32 %v232, %v232
    %v281 = vmul.f32 %v233, %v233
    %v282 = vsel %vm65, %v234, 0.0
    %v283 = vsel %vm65, %v235, 0.0
    %v284 = vadd.f32 %v282, %v283
    %v285 = vsel %vm65, %v236, 0.0
    %v286 = vadd.f32 %v284, %v285
    %v287 = vsel %vm65, %v237, 0.0
    %v288 = vadd.f32 %v286, %v287
    %v289 = vsel %vm65, %v238, 0.0
    %v290 = vadd.f32 %v288, %v289
    %v291 = vsel %vm65, %v239, 0.0
    %v292 = vadd.f32 %v290, %v291
    %v293 = vsel %vm65, %v240, 0.0
    %v294 = vadd.f32 %v292, %v293
    %v295 = vsel %vm65, %v241, 0.0
    %v296 = vadd.f32 %v294, %v295
    %v297 = vsel %vm65, %v242, 0.0
    %v298 = vadd.f32 %v296, %v297
    %v299 = vsel %vm65, %v243, 0.0
    %v300 = vadd.f32 %v298, %v299
    %v301 = vsel %vm65, %v244, 0.0
    %v302 = vadd.f32 %v300, %v301
    %v303 = vsel %vm65, %v245, 0.0
    %v304 = vadd.f32 %v302, %v303
    %v305 = vrot.slane %v304, 4
    %v306 = vadd.f32 %v304, %v305
    %v307 = vrot.slane %v306, 2
    %v308 = vadd.f32 %v306, %v307
    %v309 = vrot.slane %v308, 1
    %v310 = vadd.f32 %v308, %v309
    %v311 = vsel %vm65, %v246, 0.0
    %v312 = vsel %vm65, %v247, 0.0
    %v313 = vadd.f32 %v311, %v312
    %v314 = vsel %vm65, %v248, 0.0
    %v315 = vadd.f32 %v313, %v314
    %v316 = vsel %vm65, %v249, 0.0
    %v317 = vadd.f32 %v315, %v316
    %v318 = vsel %vm65, %v250, 0.0
    %v319 = vadd.f32 %v317, %v318
    %v320 = vsel %vm65, %v251, 0.0
    %v321 = vadd.f32 %v319, %v320
    %v322 = vsel %vm65, %v252, 0.0
    %v323 = vadd.f32 %v321, %v322
    %v324 = vsel %vm65, %v253, 0.0
    %v325 = vadd.f32 %v323, %v324
    %v326 = vsel %vm65, %v254, 0.0
    %v327 = vadd.f32 %v325, %v326
    %v328 = vsel %vm65, %v255, 0.0
    %v329 = vadd.f32 %v327, %v328
    %v330 = vsel %vm65, %v256, 0.0
    %v331 = vadd.f32 %v329, %v330
    %v332 = vsel %vm65, %v257, 0.0
    %v333 = vadd.f32 %v331, %v332
    %v334 = vrot.slane %v333, 4
    %v335 = vadd.f32 %v333, %v334
    %v336 = vrot.slane %v335, 2
    %v337 = vadd.f32 %v335, %v336
    %v338 = vrot.slane %v337, 1
    %v339 = vadd.f32 %v337, %v338
    %v340 = vsel %vm65, %v258, 0.0
    %v341 = vsel %vm65, %v259, 0.0
    %v342 = vadd.f32 %v340, %v341
    %v343 = vsel %vm65, %v260, 0.0
    %v344 = vadd.f32 %v342, %v343
    %v345 = vsel %vm65, %v261, 0.0
    %v346 = vadd.f32 %v344, %v345
    %v347 = vsel %vm65, %v262, 0.0
    %v348 = vadd.f32 %v346, %v347
    %v349 = vsel %vm65, %v263, 0.0
    %v350 = vadd.f32 %v348, %v349
    %v351 = vsel %vm65, %v264, 0.0
    %v352 = vadd.f32 %v350, %v351
    %v353 = vsel %vm65, %v265, 0.0
    %v354 = vadd.f32 %v352, %v353
    %v355 = vsel %vm65, %v266, 0.0
    %v356 = vadd.f32 %v354, %v355
    %v357 = vsel %vm65, %v267, 0.0
    %v358 = vadd.f32 %v356, %v357
    %v359 = vsel %vm65, %v268, 0.0
    %v360 = vadd.f32 %v358, %v359
    %v361 = vsel %vm65, %v269, 0.0
    %v362 = vadd.f32 %v360, %v361
    %v363 = vrot.slane %v362, 4
    %v364 = vadd.f32 %v362, %v363
    %v365 = vrot.slane %v364, 2
    %v366 = vadd.f32 %v364, %v365
    %v367 = vrot.slane %v366, 1
    %v368 = vadd.f32 %v366, %v367
    %v369 = vsel %vm65, %v270, 0.0
    %v370 = vsel %vm65, %v271, 0.0
    %v371 = vadd.f32 %v369, %v370
    %v372 = vsel %vm65, %v272, 0.0
    %v373 = vadd.f32 %v371, %v372
    %v374 = vsel %vm65, %v273, 0.0
    %v375 = vadd.f32 %v373, %v374
    %v376 = vsel %vm65, %v274, 0.0
    %v377 = vadd.f32 %v375, %v376
    %v378 = vsel %vm65, %v275, 0.0
    %v379 = vadd.f32 %v377, %v378
    %v380 = vsel %vm65, %v276, 0.0
    %v381 = vadd.f32 %v379, %v380
    %v382 = vsel %vm65, %v277, 0.0
    %v383 = vadd.f32 %v381, %v382
    %v384 = vsel %vm65, %v278, 0.0
    %v385 = vadd.f32 %v383, %v384
    %v386 = vsel %vm65, %v279, 0.0
    %v387 = vadd.f32 %v385, %v386
    %v388 = vsel %vm65, %v280, 0.0
    %v389 = vadd.f32 %v387, %v388
    %v390 = vsel %vm65, %v281, 0.0
    %v391 = vadd.f32 %v389, %v390
    %v392 = vrot.slane %v391, 4
    %v393 = vadd.f32 %v391, %v392
    %v394 = vrot.slane %v393, 2
    %v395 = vadd.f32 %v393, %v394
    %v396 = vrot.slane %v395, 1
    %v397 = vadd.f32 %v395, %v396
    %v398 = vmul.f32 %v310, 0.010416667
    %v399 = vmul.f32 %v339, 0.010416667
    %v400 = vmul.f32 %v368, 0.010416667
    %v401 = vmul.f32 %v397, 0.010416667
    %v402 = vadd.f32 %v398, 1e-05
    %v403 = vadd.f32 %v399, 1e-05
    %v404 = vadd.f32 %v400, 1e-05
    %v405 = vadd.f32 %v401, 1e-05
    %v406 = vrsqrt.pop %v402
    %v407 = vmul.f32 %v402, %v406
    %vm408 = vcmp.eq.f32.partialorder %v402, inf
    %v409 = vsel %vm408, %v402, %v407
    %vm410 = vcmp.eq.f32.partialorder %v402, 0.0
    %v411 = vand.u32 %v402, 2147483648
    %v412 = vsel %vm410, %v411, %v409
    %v413 = vrsqrt.pop %v403
    %v414 = vmul.f32 %v403, %v413
    %vm415 = vcmp.eq.f32.partialorder %v403, inf
    %v416 = vsel %vm415, %v403, %v414
    %vm417 = vcmp.eq.f32.partialorder %v403, 0.0
    %v418 = vand.u32 %v403, 2147483648
    %v419 = vsel %vm417, %v418, %v416
    %v420 = vrsqrt.pop %v404
    %v421 = vmul.f32 %v404, %v420
    %vm422 = vcmp.eq.f32.partialorder %v404, inf
    %v423 = vsel %vm422, %v404, %v421
    %vm424 = vcmp.eq.f32.partialorder %v404, 0.0
    %v425 = vand.u32 %v404, 2147483648
    %v426 = vsel %vm424, %v425, %v423
    %v427 = vrsqrt.pop %v405
    %v428 = vmul.f32 %v405, %v427
    %vm429 = vcmp.eq.f32.partialorder %v405, inf
    %v430 = vsel %vm429, %v405, %v428
    %vm431 = vcmp.eq.f32.partialorder %v405, 0.0
    %v432 = vand.u32 %v405, 2147483648
    %v433 = vsel %vm431, %v432, %v430
    %v434 = vld [vmem:[%s1] sm:$0x1]
    %v435 = vrcp.pop %v412
    %v436 = vmul.f32 %v434, %v435
    %v437 = vrcp.pop %v419
    %v438 = vmul.f32 %v434, %v437
    %v439 = vrcp.pop %v426
    %v440 = vmul.f32 %v434, %v439
    %v441 = vrcp.pop %v433
    %v442 = vmul.f32 %v434, %v441
    %v447 = vlaneseq
    %v448 = vshrl.u32 %v447, 7
    %v449 = vsub.s32 0, %v448
    %v450 = vrot.slane %v436, %v449
    %v451 = vlaneseq
    %v452 = vshrl.u32 %v451, 7
    %v453 = vsub.s32 0, %v452
    %v454 = vrot.slane %v438, %v453
    %v455 = vlaneseq
    %v456 = vshrl.u32 %v455, 7
    %v457 = vsub.s32 0, %v456
    %v458 = vrot.slane %v440, %v457
    %v459 = vlaneseq
    %v460 = vshrl.u32 %v459, 7
    %v461 = vsub.s32 0, %v460
    %v462 = vrot.slane %v442, %v461
    %v467 = vmul.f32 %v186, %v450
    %v468 = vmul.f32 %v187, %v450
    %v469 = vmul.f32 %v188, %v450
    %v470 = vmul.f32 %v189, %v450
    %v471 = vmul.f32 %v190, %v450
    %v472 = vmul.f32 %v191, %v450
    %v473 = vmul.f32 %v192, %v450
    %v474 = vmul.f32 %v193, %v450
    %v475 = vmul.f32 %v194, %v450
    %v476 = vmul.f32 %v195, %v450
    %v477 = vmul.f32 %v196, %v450
    %v478 = vmul.f32 %v197, %v450
    %v479 = vmul.f32 %v198, %v454
    %v480 = vmul.f32 %v199, %v454
    %v481 = vmul.f32 %v200, %v454
    %v482 = vmul.f32 %v201, %v454
    %v483 = vmul.f32 %v202, %v454
    %v484 = vmul.f32 %v203, %v454
    %v485 = vmul.f32 %v204, %v454
    %v486 = vmul.f32 %v205, %v454
    %v487 = vmul.f32 %v206, %v454
    %v488 = vmul.f32 %v207, %v454
    %v489 = vmul.f32 %v208, %v454
    %v490 = vmul.f32 %v209, %v454
    %v491 = vmul.f32 %v210, %v458
    %v492 = vmul.f32 %v211, %v458
    %v493 = vmul.f32 %v212, %v458
    %v494 = vmul.f32 %v213, %v458
    %v495 = vmul.f32 %v214, %v458
    %v496 = vmul.f32 %v215, %v458
    %v497 = vmul.f32 %v216, %v458
    %v498 = vmul.f32 %v217, %v458
    %v499 = vmul.f32 %v218, %v458
    %v500 = vmul.f32 %v219, %v458
    %v501 = vmul.f32 %v220, %v458
    %v502 = vmul.f32 %v221, %v458
    %v503 = vmul.f32 %v222, %v462
    %v504 = vmul.f32 %v223, %v462
    %v505 = vmul.f32 %v224, %v462
    %v506 = vmul.f32 %v225, %v462
    %v507 = vmul.f32 %v226, %v462
    %v508 = vmul.f32 %v227, %v462
    %v509 = vmul.f32 %v228, %v462
    %v510 = vmul.f32 %v229, %v462
    %v511 = vmul.f32 %v230, %v462
    %v512 = vmul.f32 %v231, %v462
    %v513 = vmul.f32 %v232, %v462
    %v514 = vmul.f32 %v233, %v462
    %v515 = vld [vmem:[%s2] sm:$0x1]
    %v517 = vlaneseq
    %v518 = vshrl.u32 %v517, 7
    %v519 = vsub.s32 0, %v518
    %v520 = vrot.slane %v515, %v519
    %v522 = vadd.f32 %v467, %v520
    %v523 = vadd.f32 %v468, %v520
    %v524 = vadd.f32 %v469, %v520
    %v525 = vadd.f32 %v470, %v520
    %v526 = vadd.f32 %v471, %v520
    %v527 = vadd.f32 %v472, %v520
    %v528 = vadd.f32 %v473, %v520
    %v529 = vadd.f32 %v474, %v520
    %v530 = vadd.f32 %v475, %v520
    %v531 = vadd.f32 %v476, %v520
    %v532 = vadd.f32 %v477, %v520
    %v533 = vadd.f32 %v478, %v520
    %v534 = vadd.f32 %v479, %v520
    %v535 = vadd.f32 %v480, %v520
    %v536 = vadd.f32 %v481, %v520
    %v537 = vadd.f32 %v482, %v520
    %v538 = vadd.f32 %v483, %v520
    %v539 = vadd.f32 %v484, %v520
    %v540 = vadd.f32 %v485, %v520
    %v541 = vadd.f32 %v486, %v520
    %v542 = vadd.f32 %v487, %v520
    %v543 = vadd.f32 %v488, %v520
    %v544 = vadd.f32 %v489, %v520
    %v545 = vadd.f32 %v490, %v520
    %v546 = vadd.f32 %v491, %v520
    %v547 = vadd.f32 %v492, %v520
    %v548 = vadd.f32 %v493, %v520
    %v549 = vadd.f32 %v494, %v520
    %v550 = vadd.f32 %v495, %v520
    %v551 = vadd.f32 %v496, %v520
    %v552 = vadd.f32 %v497, %v520
    %v553 = vadd.f32 %v498, %v520
    %v554 = vadd.f32 %v499, %v520
    %v555 = vadd.f32 %v500, %v520
    %v556 = vadd.f32 %v501, %v520
    %v557 = vadd.f32 %v502, %v520
    %v558 = vadd.f32 %v503, %v520
    %v559 = vadd.f32 %v504, %v520
    %v560 = vadd.f32 %v505, %v520
    %v561 = vadd.f32 %v506, %v520
    %v562 = vadd.f32 %v507, %v520
    %v563 = vadd.f32 %v508, %v520
    %v564 = vadd.f32 %v509, %v520
    %v565 = vadd.f32 %v510, %v520
    %v566 = vadd.f32 %v511, %v520
    %v567 = vadd.f32 %v512, %v520
    %v568 = vadd.f32 %v513, %v520
    %v569 = vadd.f32 %v514, %v520
    %570 = vst.msk [vmem:[%s3] sm:$0xff] %vm65, %v522
    %571 = vst.msk [vmem:[%s3 + $0x8] sm:$0xff] %vm65, %v523
    %572 = vst.msk [vmem:[%s3 + $0x10] sm:$0xff] %vm65, %v524
    %573 = vst.msk [vmem:[%s3 + $0x18] sm:$0xff] %vm65, %v525
    %574 = vst.msk [vmem:[%s3 + $0x20] sm:$0xff] %vm65, %v526
    %575 = vst.msk [vmem:[%s3 + $0x28] sm:$0xff] %vm65, %v527
    %576 = vst.msk [vmem:[%s3 + $0x30] sm:$0xff] %vm65, %v528
    %577 = vst.msk [vmem:[%s3 + $0x38] sm:$0xff] %vm65, %v529
    %578 = vst.msk [vmem:[%s3 + $0x40] sm:$0xff] %vm65, %v530
    %579 = vst.msk [vmem:[%s3 + $0x48] sm:$0xff] %vm65, %v531
    %580 = vst.msk [vmem:[%s3 + $0x50] sm:$0xff] %vm65, %v532
    %581 = vst.msk [vmem:[%s3 + $0x58] sm:$0xff] %vm65, %v533
    %582 = vst.msk [vmem:[%s3 + $0x60] sm:$0xff] %vm65, %v534
    %583 = vst.msk [vmem:[%s3 + $0x68] sm:$0xff] %vm65, %v535
    %584 = vst.msk [vmem:[%s3 + $0x70] sm:$0xff] %vm65, %v536
    %585 = vst.msk [vmem:[%s3 + $0x78] sm:$0xff] %vm65, %v537
    %586 = vst.msk [vmem:[%s3 + $0x80] sm:$0xff] %vm65, %v538
    %587 = vst.msk [vmem:[%s3 + $0x88] sm:$0xff] %vm65, %v539
    %588 = vst.msk [vmem:[%s3 + $0x90] sm:$0xff] %vm65, %v540
    %589 = vst.msk [vmem:[%s3 + $0x98] sm:$0xff] %vm65, %v541
    %590 = vst.msk [vmem:[%s3 + $0xa0] sm:$0xff] %vm65, %v542
    %591 = vst.msk [vmem:[%s3 + $0xa8] sm:$0xff] %vm65, %v543
    %592 = vst.msk [vmem:[%s3 + $0xb0] sm:$0xff] %vm65, %v544
    %593 = vst.msk [vmem:[%s3 + $0xb8] sm:$0xff] %vm65, %v545
    %594 = vst.msk [vmem:[%s3 + $0xc0] sm:$0xff] %vm65, %v546
    %595 = vst.msk [vmem:[%s3 + $0xc8] sm:$0xff] %vm65, %v547
    %596 = vst.msk [vmem:[%s3 + $0xd0] sm:$0xff] %vm65, %v548
    %597 = vst.msk [vmem:[%s3 + $0xd8] sm:$0xff] %vm65, %v549
    %598 = vst.msk [vmem:[%s3 + $0xe0] sm:$0xff] %vm65, %v550
    %599 = vst.msk [vmem:[%s3 + $0xe8] sm:$0xff] %vm65, %v551
    %600 = vst.msk [vmem:[%s3 + $0xf0] sm:$0xff] %vm65, %v552
    %601 = vst.msk [vmem:[%s3 + $0xf8] sm:$0xff] %vm65, %v553
    %602 = vst.msk [vmem:[%s3 + $0x100] sm:$0xff] %vm65, %v554
    %603 = vst.msk [vmem:[%s3 + $0x108] sm:$0xff] %vm65, %v555
    %604 = vst.msk [vmem:[%s3 + $0x110] sm:$0xff] %vm65, %v556
    %605 = vst.msk [vmem:[%s3 + $0x118] sm:$0xff] %vm65, %v557
    %606 = vst.msk [vmem:[%s3 + $0x120] sm:$0xff] %vm65, %v558
    %607 = vst.msk [vmem:[%s3 + $0x128] sm:$0xff] %vm65, %v559
    %608 = vst.msk [vmem:[%s3 + $0x130] sm:$0xff] %vm65, %v560
    %609 = vst.msk [vmem:[%s3 + $0x138] sm:$0xff] %vm65, %v561
    %610 = vst.msk [vmem:[%s3 + $0x140] sm:$0xff] %vm65, %v562
    %611 = vst.msk [vmem:[%s3 + $0x148] sm:$0xff] %vm65, %v563
    %612 = vst.msk [vmem:[%s3 + $0x150] sm:$0xff] %vm65, %v564
    %613 = vst.msk [vmem:[%s3 + $0x158] sm:$0xff] %vm65, %v565
    %614 = vst.msk [vmem:[%s3 + $0x160] sm:$0xff] %vm65, %v566
    %615 = vst.msk [vmem:[%s3 + $0x168] sm:$0xff] %vm65, %v567
    %616 = vst.msk [vmem:[%s3 + $0x170] sm:$0xff] %vm65, %v568
    %617 = vst.msk [vmem:[%s3 + $0x178] sm:$0xff] %vm65, %v569
    %vm618 = vcmask 40960
    %619 = vst.msk [vmem:[#allocation2] sm:$0x1] %vm618, %v182
    %620 = vst.msk [vmem:[#allocation2 + $0x2] sm:$0x1] %vm618, %v183
    %621 = vst.msk [vmem:[#allocation2 + $0x4] sm:$0x1] %vm618, %v184
    %622 = vst.msk [vmem:[#allocation2 + $0x6] sm:$0x1] %vm618, %v185
    %623 = vst.msk [vmem:[#allocation2 + $0x1] sm:$0x1] %vm618, %v412
    %624 = vst.msk [vmem:[#allocation2 + $0x3] sm:$0x1] %vm618, %v419
    %625 = vst.msk [vmem:[#allocation2 + $0x5] sm:$0x1] %vm618, %v426
    %626 = vst.msk [vmem:[#allocation2 + $0x7] sm:$0x1] %vm618, %v433
    // Predicated region
    $region14: #{tpu_custom_call.1} parent=1 // pred_check
      _
    $region15: #{tpu_custom_call.1} parent=1 // pred_check_branch
      %628 = sbr.rel (0) target = $region17
    $region16: #{tpu_custom_call.1} parent=1 // pred_region
      _
    $region17: #{tpu_custom_call.1} parent=1 // pred_fallthru
      _
    // Predicated region
    $region18: #{tpu_custom_call.1} parent=1 // pred_check
      _
    $region19: #{tpu_custom_call.1} parent=1 // pred_check_branch
      %630 = sbr.rel (0) target = $region21
    $region20: #{tpu_custom_call.1} parent=1 // pred_region
      %s632 = ssub.s32 128, 128
      %633 = vsyncadd [#allocation3], %s632
      %s634 = sshll.u32 [#allocation2], 4
      %s635 = int_to_ptr.vmem [resolvable:$true] %s634
      %640 = dma.vmem_to_hbm [thread:$0]  %s635, 128, %s4, [#allocation3], 32, 32, 2
    $region21: #{tpu_custom_call.1} parent=1 // pred_fallthru
      _
    // Predicated region
    $region22: #{tpu_custom_call.1} parent=1 // pred_check
      _
    $region23: #{tpu_custom_call.1} parent=1 // pred_check_branch
      %642 = sbr.rel (0) target = $region25
    $region24: #{tpu_custom_call.1} parent=1 // pred_region
      _
    $region25: #{tpu_custom_call.1} parent=1 // pred_fallthru
      _
    // Predicated region
    $region26: #{tpu_custom_call.1} parent=1 // pred_check
      _
    $region27: #{tpu_custom_call.1} parent=1 // pred_check_branch
      %644 = sbr.rel (0) target = $region29
    $region28: #{tpu_custom_call.1} parent=1 // pred_region
      %645 = dma.done [#allocation3], 128
    $region29: #{tpu_custom_call.1} parent=1 // pred_fallthru
      _
    %646 = vsyncpa [#allocation3], 1

</llo_original>
